<compile_context>
chip_gen: v7x
topology: tpu7x:2x2x1
jax: 0.10.0
libtpu: 0.0.40
codegen_flags: <defaults>
</compile_context>

<pallas_src>
import jax
import jax.numpy as jnp
from jax.experimental import pallas as pl
from jax.experimental.pallas import tpu as pltpu

BN_EPS = 1e-5


def _vmem_limit_bytes():
    """Per-generation VMEM budget: ~3/4 of physical, capped at 96 MiB.

    v5e/v6e: 128 MiB physical -> 96 MiB budget.  v7x: 64 MiB physical -> 48 MiB.
    Falls back to a conservative 48 MiB if the query is unavailable.
    """
    cap = 64 * 1024 * 1024
    try:
        info = pltpu.get_tpu_info()
        cap = int(getattr(info, "vmem_capacity_bytes", cap))
    except Exception:
        pass
    return int(min(cap * 3 // 4, 96 * 1024 * 1024))


# ---------------------------------------------------------------------------
# Kernels
# ---------------------------------------------------------------------------

def _conv0_stats_kernel(x_ref, w0_ref, st_ref):
    """conv0 (K=3 -> VPU broadcast-FMAs, no bias) on a row tile; emit BN0 partials only."""
    x = x_ref[...]                       # (TR, n) f32
    w0 = w0_ref[...]                     # (n, C0) f32
    h = x[:, 0:1] * w0[0:1, :]
    for k in range(1, w0.shape[0]):
        h = h + x[:, k:k + 1] * w0[k:k + 1, :]
    st_ref[...] = jnp.concatenate(
        [jnp.sum(h, axis=0, keepdims=True),
         jnp.sum(h * h, axis=0, keepdims=True)], axis=0)


def _conv1_stats_kernel(x_ref, w0_ref, sc0_ref, sh0_ref, w1_ref, st_ref):
    """Recompute conv0 -> bn0+relu (folded affine) -> conv1 (bf16 MXU, no bias);
    emit BN1 partial stats only.  h1 never hits HBM."""
    x = x_ref[...]
    w0 = w0_ref[...]
    h0 = x[:, 0:1] * w0[0:1, :]
    for k in range(1, w0.shape[0]):
        h0 = h0 + x[:, k:k + 1] * w0[k:k + 1, :]
    a0 = jnp.maximum(h0 * sc0_ref[...] + sh0_ref[...], 0.0)
    h1 = jnp.dot(a0.astype(jnp.bfloat16), w1_ref[...],
                 preferred_element_type=jnp.float32)
    st_ref[...] = jnp.concatenate(
        [jnp.sum(h1, axis=0, keepdims=True),
         jnp.sum(h1 * h1, axis=0, keepdims=True)], axis=0)


def _fused_conv_pool_kernel(x_ref, w0_ref, sc0_ref, sh0_ref,
                            w1_ref, sc1_ref, sh1_ref, w2_ref,
                            maxv_ref, minv_ref, ssq_ref, suma_ref):
    """Recompute conv0/conv1 -> bn1+relu -> conv2 (bf16 MXU, no bias), fused with
    per-batch running max/min pooling, sum-of-squares and the narrow activation sum.

    Grid is (batch_block_index, point_tile); the (TT, 1024) conv2 tile lives only in
    VMEM.  Outputs are revisited (accumulated) along the point-tile ("arbitrary") axis.
    """
    t = pl.program_id(1)
    first = t == 0
    bblk = x_ref.shape[0]
    n = x_ref.shape[2]
    w0 = w0_ref[...]

    for bb in range(bblk):               # static unroll over the batch sub-block
        x = x_ref[bb]                    # (TT, n) f32
        h0 = x[:, 0:1] * w0[0:1, :]
        for k in range(1, n):
            h0 = h0 + x[:, k:k + 1] * w0[k:k + 1, :]
        a0 = jnp.maximum(h0 * sc0_ref[...] + sh0_ref[...], 0.0).astype(jnp.bfloat16)
        h1 = jnp.dot(a0, w1_ref[...], preferred_element_type=jnp.float32)   # (TT, C1)
        a1 = jnp.maximum(h1 * sc1_ref[...] + sh1_ref[...], 0.0).astype(jnp.bfloat16)
        h2 = jnp.dot(a1, w2_ref[...], preferred_element_type=jnp.float32)   # (TT, C2)

        t_max = jnp.max(h2, axis=0, keepdims=True)                          # (1, C2)
        t_min = jnp.min(h2, axis=0, keepdims=True)                          # (1, C2)
        t_ssq = jnp.sum(h2 * h2, axis=0, keepdims=True)                     # (1, C2)
        t_sa = jnp.sum(a1.astype(jnp.float32), axis=0, keepdims=True)       # (1, C1)

        @pl.when(first)
        def _():
            maxv_ref[bb] = t_max
            minv_ref[bb] = t_min
            ssq_ref[bb] = t_ssq
            suma_ref[bb] = t_sa

        @pl.when(jnp.logical_not(first))
        def _():
            maxv_ref[bb] = jnp.maximum(maxv_ref[bb], t_max)
            minv_ref[bb] = jnp.minimum(minv_ref[bb], t_min)
            ssq_ref[bb] = ssq_ref[bb] + t_ssq
            suma_ref[bb] = suma_ref[bb] + t_sa


def _bn_relu(h, gamma, beta):
    """Training-mode BatchNorm1d over rows (biased variance) + relu."""
    mu = jnp.mean(h, axis=0, keepdims=True)
    var = jnp.mean(jnp.square(h - mu), axis=0, keepdims=True)
    return jnp.maximum((h - mu) * jax.lax.rsqrt(var + BN_EPS) * gamma + beta, 0.0)


def _fc_tail_kernel(maxv_ref, minv_ref, sc2_ref, sh2_ref,
                    wf0_ref, bf0_ref, g3_ref, be3_ref,
                    wf1_ref, bf1_ref, g4_ref, be4_ref,
                    wf2_ref, bf2_ref, eye_ref, out_ref):
    """bn2+relu on the pooled extrema, then fc0/bn3/relu, fc1/bn4/relu, fc2 + eye."""
    sc2 = sc2_ref[...]
    # max over points of relu(bn2(conv2)) == relu(extremum * sc2 + sh2); the extremum
    # (max for scale>=0, min for scale<0) is taken on the pre-bias conv2 values and
    # b2 is folded into sh2, so this is exact for any sign of gamma2.
    pre = jnp.where(sc2 >= 0.0, maxv_ref[...], minv_ref[...])
    pooled = jnp.maximum(pre * sc2 + sh2_ref[...], 0.0)                 # (B, C2) f32

    f = jnp.dot(pooled.astype(jnp.bfloat16), wf0_ref[...],
                preferred_element_type=jnp.float32) + bf0_ref[...]
    f = _bn_relu(f, g3_ref[...], be3_ref[...])
    f = jnp.dot(f.astype(jnp.bfloat16), wf1_ref[...],
                preferred_element_type=jnp.float32) + bf1_ref[...]
    f = _bn_relu(f, g4_ref[...], be4_ref[...])
    f = jnp.dot(f.astype(jnp.bfloat16), wf2_ref[...],
                preferred_element_type=jnp.float32) + bf2_ref[...]
    out_ref[...] = f + eye_ref[...]


# ---------------------------------------------------------------------------
# Host-side wrapper
# ---------------------------------------------------------------------------

def _pick_tile(total, target):
    """Largest divisor of `total` <= target, preferring multiples of 8."""
    if total <= target:
        return total
    best_any = None
    for cand in range(target, 0, -1):
        if total % cand == 0:
            if cand % 8 == 0:
                return cand
            if best_any is None:
                best_any = cand
    return best_any if best_any is not None else total


def _pick_div(total, target):
    """Largest divisor of `total` <= target."""
    for cand in range(min(total, target), 0, -1):
        if total % cand == 0:
            return cand
    return total


def _bn_affine(sum_nb, sumsq_nb, count, bias, gamma, beta):
    """BN scale/shift from sums of the PRE-BIAS linear output (bias folded into shift).

    Kernels then apply `relu(h_nobias * scale + shift)` directly.
    """
    s = sum_nb + count * bias
    q = sumsq_nb + 2.0 * bias * sum_nb + count * jnp.square(bias)
    mean = s / count
    var = jnp.maximum(q / count - mean * mean, 0.0)      # biased (training-mode) var
    scale = gamma * jax.lax.rsqrt(var + BN_EPS)
    shift = beta - mean * scale + scale * bias
    return scale, shift


def tnet_forward(x_ncl, params, *, row_tile=8192, batch_block=2, point_tile=1024):
    """x_ncl: (B, n, L) float32, same layout as the torch module's input."""
    p = params
    B, n, L = x_ncl.shape
    BL = B * L
    C0 = p["w0"].shape[1]       # 64
    C1 = p["w1"].shape[1]       # 128
    C2 = p["w2"].shape[1]       # 1024
    nn_ = p["wf2"].shape[1]     # n*n

    # NCL -> (B*L, n) channels-last rows (cheap layout glue in plain JAX).
    x = jnp.transpose(x_ncl, (0, 2, 1)).reshape(BL, n).astype(jnp.float32)
    x_bln = x.reshape(B, L, n)

    TR = _pick_tile(BL, row_tile)        # rows per tile for the two stats passes
    Bblk = _pick_div(B, batch_block)     # batches per pass-3 grid step
    TT = _pick_tile(L, point_tile)       # points per pass-3 grid step
    nrt = BL // TR
    nbb = B // Bblk
    npt = L // TT
    count = float(BL)

    vlim = _vmem_limit_bytes()
    cp_rows = pltpu.CompilerParams(dimension_semantics=("parallel",),
                                   vmem_limit_bytes=vlim)

    # ---- Pass 1: conv0 -> bn0 partial stats (stats only; h0 never hits HBM) --------
    st0 = pl.pallas_call(
        _conv0_stats_kernel,
        out_shape=jax.ShapeDtypeStruct((nrt, 2, C0), jnp.float32),
        grid=(nrt,),
        in_specs=[
            pl.BlockSpec((TR, n), lambda i: (i, 0)),
            pl.BlockSpec((n, C0), lambda i: (0, 0)),
        ],
        out_specs=pl.BlockSpec((None, 2, C0), lambda i: (i, 0, 0)),
        compiler_params=cp_rows,
    )(x, p["w0"])
    s0 = jnp.sum(st0, axis=0)
    sc0, sh0 = _bn_affine(s0[0:1], s0[1:2], count, p["b0"], p["g0"], p["be0"])

    # ---- Pass 2: recompute conv0 -> bn0+relu -> conv1 -> bn1 partial stats ----------
    st1 = pl.pallas_call(
        _conv1_stats_kernel,
        out_shape=jax.ShapeDtypeStruct((nrt, 2, C1), jnp.float32),
        grid=(nrt,),
        in_specs=[
            pl.BlockSpec((TR, n), lambda i: (i, 0)),
            pl.BlockSpec((n, C0), lambda i: (0, 0)),
            pl.BlockSpec((1, C0), lambda i: (0, 0)),
            pl.BlockSpec((1, C0), lambda i: (0, 0)),
            pl.BlockSpec((C0, C1), lambda i: (0, 0)),
        ],
        out_specs=pl.BlockSpec((None, 2, C1), lambda i: (i, 0, 0)),
        compiler_params=cp_rows,
    )(x, p["w0"], sc0, sh0, p["w1"])
    s1 = jnp.sum(st1, axis=0)
    sc1, sh1 = _bn_affine(s1[0:1], s1[1:2], count, p["b1"], p["g1"], p["be1"])

    # ---- Pass 3: recompute conv0/conv1 -> bn1+relu -> conv2, fused pooling + stats --
    maxv, minv, ssq, suma = pl.pallas_call(
        _fused_conv_pool_kernel,
        out_shape=(jax.ShapeDtypeStruct((B, 1, C2), jnp.float32),
                   jax.ShapeDtypeStruct((B, 1, C2), jnp.float32),
                   jax.ShapeDtypeStruct((B, 1, C2), jnp.float32),
                   jax.ShapeDtypeStruct((B, 1, C1), jnp.float32)),
        grid=(nbb, npt),
        in_specs=[
            pl.BlockSpec((Bblk, TT, n), lambda b, t: (b, t, 0)),
            pl.BlockSpec((n, C0), lambda b, t: (0, 0)),
            pl.BlockSpec((1, C0), lambda b, t: (0, 0)),
            pl.BlockSpec((1, C0), lambda b, t: (0, 0)),
            pl.BlockSpec((C0, C1), lambda b, t: (0, 0)),
            pl.BlockSpec((1, C1), lambda b, t: (0, 0)),
            pl.BlockSpec((1, C1), lambda b, t: (0, 0)),
            pl.BlockSpec((C1, C2), lambda b, t: (0, 0)),
        ],
        out_specs=(
            pl.BlockSpec((Bblk, 1, C2), lambda b, t: (b, 0, 0)),
            pl.BlockSpec((Bblk, 1, C2), lambda b, t: (b, 0, 0)),
            pl.BlockSpec((Bblk, 1, C2), lambda b, t: (b, 0, 0)),
            pl.BlockSpec((Bblk, 1, C1), lambda b, t: (b, 0, 0)),
        ),
        compiler_params=pltpu.CompilerParams(
            dimension_semantics=("parallel", "arbitrary"),
            vmem_limit_bytes=vlim),
    )(x_bln, p["w0"], sc0, sh0, p["w1"], sc1, sh1, p["w2"])

    # bn2 stats: column-sum of conv2 == (column-sum of the bn1+relu activation) @ W2,
    # done once on host in f32; sumsq comes from the kernel; b2 corrected analytically.
    sum_a1 = jnp.sum(suma.reshape(B, C1), axis=0, keepdims=True)            # (1, C1)
    sum_h2 = jnp.dot(sum_a1, p["w2"].astype(jnp.float32))                   # (1, C2)
    sumsq_h2 = jnp.sum(ssq.reshape(B, C2), axis=0, keepdims=True)           # (1, C2)
    sc2, sh2 = _bn_affine(sum_h2, sumsq_h2, count, p["b2"], p["g2"], p["be2"])

    # ---- Pass 4: tiny FC tail (pooled -> 512 -> 256 -> n*n + eye) -------------------
    operands = [maxv.reshape(B, C2), minv.reshape(B, C2), sc2, sh2,
                p["wf0"], p["bf0"], p["g3"], p["be3"],
                p["wf1"], p["bf1"], p["g4"], p["be4"],
                p["wf2"], p["bf2"], p["eye"]]

    def full_spec(a):
        nd = a.ndim
        return pl.BlockSpec(a.shape, lambda *_, _nd=nd: (0,) * _nd)

    out = pl.pallas_call(
        _fc_tail_kernel,
        out_shape=jax.ShapeDtypeStruct((B, nn_), jnp.float32),
        grid=(1,),
        in_specs=[full_spec(a) for a in operands],
        out_specs=pl.BlockSpec((B, nn_), lambda *_: (0, 0)),
        compiler_params=pltpu.CompilerParams(vmem_limit_bytes=vlim),
    )(*operands)
    return out.reshape(B, n, n)


# ---------------------------------------------------------------------------
# Parameters + pure-JAX reference
# ---------------------------------------------------------------------------

def init_params(key, n=3):
    """Deterministic init matching the torch module's shapes.

    Conv1d(k=1) weights (C_out, C_in, 1) and Linear weights (C_out, C_in) are stored
    pre-transposed as (C_in, C_out).  All heavy matmul weights (w1, w2, wf0, wf1, wf2)
    are bf16.  BatchNorm affine params use torch defaults (gamma=1, beta=0).
    """
    ks = jax.random.split(key, 6)

    def lin(k, fi, fo):
        bound = 1.0 / (fi ** 0.5)
        kw, kb = jax.random.split(k)
        w = jax.random.uniform(kw, (fi, fo), jnp.float32, -bound, bound)
        b = jax.random.uniform(kb, (1, fo), jnp.float32, -bound, bound)
        return w, b

    w0, b0 = lin(ks[0], n, 64)
    w1, b1 = lin(ks[1], 64, 128)
    w2, b2 = lin(ks[2], 128, 1024)
    wf0, bf0 = lin(ks[3], 1024, 512)
    wf1, bf1 = lin(ks[4], 512, 256)
    wf2, bf2 = lin(ks[5], 256, n * n)

    ones = lambda c: jnp.ones((1, c), jnp.float32)
    zeros = lambda c: jnp.zeros((1, c), jnp.float32)
    return dict(
        w0=w0, b0=b0, g0=ones(64), be0=zeros(64),
        w1=w1.astype(jnp.bfloat16), b1=b1, g1=ones(128), be1=zeros(128),
        w2=w2.astype(jnp.bfloat16), b2=b2, g2=ones(1024), be2=zeros(1024),
        wf0=wf0.astype(jnp.bfloat16), bf0=bf0, g3=ones(512), be3=zeros(512),
        wf1=wf1.astype(jnp.bfloat16), bf1=bf1, g4=ones(256), be4=zeros(256),
        wf2=wf2.astype(jnp.bfloat16), bf2=bf2,
        eye=jnp.eye(n, dtype=jnp.float32).reshape(1, n * n))


def reference_forward(x_ncl, p):
    """Plain-JAX reference with the same dtype policy (bf16 heavy matmuls, f32 BN)."""
    B, n, L = x_ncl.shape
    x = jnp.transpose(x_ncl, (0, 2, 1)).reshape(B * L, n).astype(jnp.float32)

    h0 = x @ p["w0"] + p["b0"]
    a0 = _bn_relu(h0, p["g0"], p["be0"])
    h1 = jnp.dot(a0.astype(jnp.bfloat16), p["w1"],
                 preferred_element_type=jnp.float32) + p["b1"]
    a1 = _bn_relu(h1, p["g1"], p["be1"])
    h2 = jnp.dot(a1.astype(jnp.bfloat16), p["w2"],
                 preferred_element_type=jnp.float32) + p["b2"]
    a2 = _bn_relu(h2, p["g2"], p["be2"])
    pooled = jnp.max(a2.reshape(B, L, -1), axis=1)

    f = jnp.dot(pooled.astype(jnp.bfloat16), p["wf0"],
                preferred_element_type=jnp.float32) + p["bf0"]
    f = _bn_relu(f, p["g3"], p["be3"])
    f = jnp.dot(f.astype(jnp.bfloat16), p["wf1"],
                preferred_element_type=jnp.float32) + p["bf1"]
    f = _bn_relu(f, p["g4"], p["be4"])
    f = jnp.dot(f.astype(jnp.bfloat16), p["wf2"],
                preferred_element_type=jnp.float32) + p["bf2"]
    return (f + p["eye"]).reshape(B, n, n)


if __name__ == "__main__":
    key = jax.random.PRNGKey(0)
    kx, kp = jax.random.split(key)

    B, n, L = 2, 3, 16  # small stand-in for torch.rand(32, 3, 1024)
    x = jax.random.uniform(kx, (B, n, L), dtype=jnp.float32)
    params = init_params(kp, n=n)

    # Small tiles: exercises multi-step grids, streaming BN stats and the running
    # max/min/sum accumulation along the point-tile axis.
    out_tiled = tnet_forward(x, params, row_tile=8, batch_block=1, point_tile=8)
    # Production-default tile sizes (single tile per pass at this toy shape).
    out_default = tnet_forward(x, params)
    ref = reference_forward(x, params)

    # Negative bn2 gammas exercise the min-accumulator branch of the pooled-BN fusion.
    C2 = params["g2"].shape[1]
    signs = jnp.where(jnp.arange(C2) % 2 == 0, 1.0, -1.0).reshape(1, C2)
    params_neg = dict(params)
    params_neg["g2"] = params["g2"] * signs
    out_neg = tnet_forward(x, params_neg, row_tile=8, batch_block=1, point_tile=8)
    ref_neg = reference_forward(x, params_neg)

    (out_tiled, out_default, ref, out_neg, ref_neg) = jax.block_until_ready(
        (out_tiled, out_default, ref, out_neg, ref_neg))
    assert out_tiled.shape == (B, n, n) and out_tiled.dtype == jnp.float32
    assert out_default.shape == (B, n, n)
    err1 = float(jnp.max(jnp.abs(out_tiled - ref)))
    err2 = float(jnp.max(jnp.abs(out_default - ref)))
    err3 = float(jnp.max(jnp.abs(out_neg - ref_neg)))
    assert err1 < 5e-2 and err2 < 5e-2 and err3 < 5e-2, (err1, err2, err3)
    print("KERNEL_OK")
</pallas_src>

<mosaic_0001>
module attributes {stable_mosaic.version = 11 : i64} {
  func.func @_conv0_stats_kernel(%arg0: i32, %arg1: memref<8x3xf32, #tpu.memory_space<vmem>>, %arg2: memref<3x64xf32, #tpu.memory_space<vmem>>, %arg3: memref<1x2x64xf32, #tpu.memory_space<vmem>>) attributes {dimension_semantics = [#tpu.dimension_semantics<parallel>], iteration_bounds = array<i64: 4>, scalar_prefetch = 0 : i64, scratch_operands = 0 : i64, tpu.core_type = #tpu.core_type<tc>, window_params = [{transform_indices = @transform_0, window_bounds = array<i64: 8, 3>}, {pipeline_mode = #tpu.pipeline_mode<synchronous>, transform_indices = @transform_1, window_bounds = array<i64: 3, 64>}, {transform_indices = @transform_2, window_bounds = array<i64: 1, 2, 64>}]} {
    %c0 = arith.constant 0 : index
    %c0_0 = arith.constant 0 : index
    %0 = vector.load %arg1[%c0, %c0_0] : memref<8x3xf32, #tpu.memory_space<vmem>>, vector<8x3xf32>
    %c0_1 = arith.constant 0 : index
    %c0_2 = arith.constant 0 : index
    %1 = vector.load %arg2[%c0_1, %c0_2] : memref<3x64xf32, #tpu.memory_space<vmem>>, vector<3x64xf32>
    %2 = vector.extract_strided_slice %0 {offsets = [0, 0], sizes = [8, 1], strides = [1, 1]} : vector<8x3xf32> to vector<8x1xf32>
    %3 = vector.extract_strided_slice %1 {offsets = [0, 0], sizes = [1, 64], strides = [1, 1]} : vector<3x64xf32> to vector<1x64xf32>
    %4 = vector.broadcast %2 : vector<8x1xf32> to vector<8x64xf32>
    %5 = vector.broadcast %3 : vector<1x64xf32> to vector<8x64xf32>
    %6 = arith.mulf %4, %5 : vector<8x64xf32>
    %7 = vector.extract_strided_slice %0 {offsets = [0, 1], sizes = [8, 1], strides = [1, 1]} : vector<8x3xf32> to vector<8x1xf32>
    %8 = vector.extract_strided_slice %1 {offsets = [1, 0], sizes = [1, 64], strides = [1, 1]} : vector<3x64xf32> to vector<1x64xf32>
    %9 = vector.broadcast %7 : vector<8x1xf32> to vector<8x64xf32>
    %10 = vector.broadcast %8 : vector<1x64xf32> to vector<8x64xf32>
    %11 = arith.mulf %9, %10 : vector<8x64xf32>
    %12 = arith.addf %6, %11 : vector<8x64xf32>
    %13 = vector.extract_strided_slice %0 {offsets = [0, 2], sizes = [8, 1], strides = [1, 1]} : vector<8x3xf32> to vector<8x1xf32>
    %14 = vector.extract_strided_slice %1 {offsets = [2, 0], sizes = [1, 64], strides = [1, 1]} : vector<3x64xf32> to vector<1x64xf32>
    %15 = vector.broadcast %13 : vector<8x1xf32> to vector<8x64xf32>
    %16 = vector.broadcast %14 : vector<1x64xf32> to vector<8x64xf32>
    %17 = arith.mulf %15, %16 : vector<8x64xf32>
    %18 = arith.addf %12, %17 : vector<8x64xf32>
    %cst = arith.constant dense<0.000000e+00> : vector<64xf32>
    %19 = vector.multi_reduction <add>, %18, %cst [0] : vector<8x64xf32> to vector<64xf32>
    %20 = vector.shape_cast %19 : vector<64xf32> to vector<1x64xf32>
    %21 = arith.mulf %18, %18 : vector<8x64xf32>
    %cst_3 = arith.constant dense<0.000000e+00> : vector<64xf32>
    %22 = vector.multi_reduction <add>, %21, %cst_3 [0] : vector<8x64xf32> to vector<64xf32>
    %23 = vector.shape_cast %22 : vector<64xf32> to vector<1x64xf32>
    %24 = tpu.concatenate %20, %23 in 0 : vector<1x64xf32>, vector<1x64xf32> -> vector<2x64xf32>
    %c0_4 = arith.constant 0 : index
    %c0_5 = arith.constant 0 : index
    %c0_6 = arith.constant 0 : index
    %25 = vector.load %arg3[%c0_4, %c0_5, %c0_6] : memref<1x2x64xf32, #tpu.memory_space<vmem>>, vector<1x2x64xf32>
    %26 = vector.shape_cast %25 : vector<1x2x64xf32> to vector<2x64xf32>
    %27 = vector.shape_cast %24 : vector<2x64xf32> to vector<1x2x64xf32>
    tpu.vector_store %arg3[%c0_4, %c0_5, %c0_6], %27 {strides = array<i32>} : memref<1x2x64xf32, #tpu.memory_space<vmem>>, vector<1x2x64xf32>,
    return
  }
  func.func @transform_0(%arg0: i32) -> (i32, i32) {
    %c0_i32 = arith.constant 0 : i32
    %c0_i32_0 = arith.constant 0 : i32
    return %arg0, %c0_i32 : i32, i32
  }
  func.func @transform_1(%arg0: i32) -> (i32, i32) {
    %c0_i32 = arith.constant 0 : i32
    %c0_i32_0 = arith.constant 0 : i32
    %c0_i32_1 = arith.constant 0 : i32
    return %c0_i32, %c0_i32_0 : i32, i32
  }
  func.func @transform_2(%arg0: i32) -> (i32, i32, i32) {
    %c0_i32 = arith.constant 0 : i32
    %c0_i32_0 = arith.constant 0 : i32
    %c0_i32_1 = arith.constant 0 : i32
    return %arg0, %c0_i32, %c0_i32_0 : i32, i32, i32
  }
}

</mosaic_0001>

<llo_original>
// kernel: tpu_custom_call.1
$region0: #{tpu_custom_call.1}
  #allocation0 [shape = 'u32[]', space=smem, size = 0x4, offset = 0x4, fixed_abs, tag = 'smem constant byte address 0x4 - core index']
  #allocation1 [shape = 'u32[144,128]{1,0:T(1,128)}', space=vmem, size = 0x12000, scoped, tag = 'internal scratch']
  %s0 = inlined_call_operand.vmem [shape: f32[32,3], index: 0, kind: input, shape index: {}]
  %s1 = inlined_call_operand.vmem [shape: f32[3,64], index: 1, kind: input, shape index: {}]
  %s2 = inlined_call_operand.hbm [shape: f32[4,2,64], index: 2, kind: output, shape index: {}]
  %s3 = sld [smem:[#allocation0]]
  $region41: #{tpu_custom_call.1} parent=0
    _
  %s5 = ssub.s32 1, %s3
  %s6 = scalar_select 0, %s5, %s3
  $region1: #{tpu_custom_call.1} parent=0
    #allocation2 [shape = 'u8[2048]{0}', space=vmem, size = 0x800, scoped, tag = 'output window, operand 0']
    #allocation3 [shape = 's32[2]{0}', space=sflag, size = 0x8, scoped, tag = 'scoped memory for tpu_custom_call.1']
    %7 = vsyncpa [#allocation3], 0
    %s8 = scalar_lea.sflag [#allocation3], 1
    %9 = vsyncpa %s8, 0
    loop: start=0, step=1, limit=6
    $region2: #{tpu_custom_call.1} parent=1 // loop_pre_header
      _
    $region3: #{tpu_custom_call.1} parent=1 // loop_header
      %s11 = sphi 0, %s15
      %p12 = scmp.ge.s32.totalorder %s11, 6
      %s21 = sphi 0, %s23
      %s24 = sphi 0, %s21
      %s25 = sphi 0, %s24
      %s41 = sphi 0, %s25
      %s45 = sphi 0, %s45
      %s47 = sphi 0, %s45
      %s48 = sphi 0, %s47
      %s62 = sphi 0, %s48
      %s68 = sphi 0, %s70
      %s71 = sphi 0, %s68
      %s72 = sphi 0, %s71
      %s88 = sphi 0, %s72
    $region4: #{tpu_custom_call.1} parent=1 // loop_header_branch
      %14 = sbr.rel (%p12) target = $region8
    $region5: #{tpu_custom_call.1} parent=1 // loop_body
      %s16 = ssub.s32 %s11, 1
      %s17 = ssub.s32 %s11, 2
      %s18 = sadd.s32 %s11, 1
      %s19 = ssub.s32 %s11, %s18
      %p20 = scmp.eq.s32.totalorder %s19, 0
      %s22 = sadd.s32 %s21, 1
      %s23 = scalar_select %p20, %s21, %s22
      %p26 = pneg %p20
      %p27 = scmp.eq.s32.totalorder %s11, 3
      %p28 = por %p26, %p27
      %p29 = scmp.ne.s32.totalorder %s21, %s24
      %p30 = scmp.eq.s32.totalorder %s11, 0
      %p31 = por %p29, %p30
      %p32 = scmp.ne.s32.totalorder %s21, %s24
      %p33 = scmp.eq.s32.totalorder %s16, 3
      %p34 = por %p32, %p33
      %p35 = scmp.ne.s32.totalorder %s24, %s25
      %p36 = scmp.eq.s32.totalorder %s16, 0
      %p37 = por %p35, %p36
      %p38 = scmp.ne.s32.totalorder %s24, %s25
      %p39 = scmp.eq.s32.totalorder %s17, 3
      %p40 = por %p38, %p39
      %p42 = scmp.ne.s32.totalorder %s25, %s41
      %p43 = scmp.eq.s32.totalorder %s17, 0
      %p44 = por %p42, %p43
      %s46 = sadd.s32 %s45, 1
      %p49 = scmp.eq.s32.totalorder %s11, 3
      %p50 = scmp.ne.s32.totalorder %s45, %s47
      %p51 = scmp.eq.s32.totalorder %s11, 0
      %p52 = por %p50, %p51
      %p53 = scmp.ne.s32.totalorder %s45, %s47
      %p54 = scmp.eq.s32.totalorder %s16, 3
      %p55 = por %p53, %p54
      %p56 = scmp.ne.s32.totalorder %s47, %s48
      %p57 = scmp.eq.s32.totalorder %s16, 0
      %p58 = por %p56, %p57
      %p59 = scmp.ne.s32.totalorder %s47, %s48
      %p60 = scmp.eq.s32.totalorder %s17, 3
      %p61 = por %p59, %p60
      %p63 = scmp.ne.s32.totalorder %s48, %s62
      %p64 = scmp.eq.s32.totalorder %s17, 0
      %p65 = por %p63, %p64
      %s66 = ssub.s32 %s11, %s18
      %p67 = scmp.eq.s32.totalorder %s66, 0
      %s69 = sadd.s32 %s68, 1
      %s70 = scalar_select %p67, %s68, %s69
      %p73 = pneg %p67
      %p74 = scmp.eq.s32.totalorder %s11, 3
      %p75 = por %p73, %p74
      %p76 = scmp.ne.s32.totalorder %s68, %s71
      %p77 = scmp.eq.s32.totalorder %s11, 0
      %p78 = por %p76, %p77
      %p79 = scmp.ne.s32.totalorder %s68, %s71
      %p80 = scmp.eq.s32.totalorder %s16, 3
      %p81 = por %p79, %p80
      %p82 = scmp.ne.s32.totalorder %s71, %s72
      %p83 = scmp.eq.s32.totalorder %s16, 0
      %p84 = por %p82, %p83
      %p85 = scmp.ne.s32.totalorder %s71, %s72
      %p86 = scmp.eq.s32.totalorder %s17, 3
      %p87 = por %p85, %p86
      %p89 = scmp.ne.s32.totalorder %s72, %s88
      %p90 = scmp.eq.s32.totalorder %s17, 0
      %p91 = por %p89, %p90
      %p92 = scmp.le.s32.totalorder 1, %s11
      %p93 = scmp.lt.s32.totalorder %s11, 5
      %p94 = pnand %p92, %p93
      %p95 = pneg %p94
      // Predicated region
      $region9: #{tpu_custom_call.1} parent=5 // pred_check
        _
      $region10: #{tpu_custom_call.1} parent=5 // pred_check_branch
        %97 = sbr.rel (%p94) target = $region12
      $region11: #{tpu_custom_call.1} parent=5 // pred_region
        %s98 = ssub.s32 %s11, 1
        // Predicated region
        $region13: #{tpu_custom_call.1} parent=11 // pred_check
          %p99 = pneg %p58
        $region14: #{tpu_custom_call.1} parent=11 // pred_check_branch
          %101 = sbr.rel (%p99) target = $region16
        $region15: #{tpu_custom_call.1} parent=11 // pred_region
          _
        $region16: #{tpu_custom_call.1} parent=11 // pred_fallthru
          _
      $region12: #{tpu_custom_call.1} parent=5 // pred_fallthru
        _
      %p102 = scmp.lt.s32.totalorder %s11, 4
      // Predicated region
      $region17: #{tpu_custom_call.1} parent=5 // pred_check
        %p103 = pneg %p102
      $region18: #{tpu_custom_call.1} parent=5 // pred_check_branch
        %105 = sbr.rel (%p103) target = $region20
      $region19: #{tpu_custom_call.1} parent=5 // pred_region
        // Predicated region
        $region21: #{tpu_custom_call.1} parent=19 // pred_check
          %p106 = pneg %p31
        $region22: #{tpu_custom_call.1} parent=19 // pred_check_branch
          %108 = sbr.rel (%p106) target = $region24
        $region23: #{tpu_custom_call.1} parent=19 // pred_region
          %p109 = scmp.lt.s32.totalorder %s11, 3
          %s110 = scalar_select %p109, %s11, 3
          %s111 = smul.addr %s110, 8
          %s112 = scalar_lea.vmem %s0, %s111
        $region24: #{tpu_custom_call.1} parent=19 // pred_fallthru
          _
      $region20: #{tpu_custom_call.1} parent=5 // pred_fallthru
        _
      %p113 = scmp.le.s32.totalorder 1, %s11
      %p114 = scmp.lt.s32.totalorder %s11, 5
      %p115 = pnand %p113, %p114
      %p116 = pneg %p115
      // Predicated region
      $region25: #{tpu_custom_call.1} parent=5 // pred_check
        _
      $region26: #{tpu_custom_call.1} parent=5 // pred_check_branch
        %118 = sbr.rel (%p115) target = $region28
      $region27: #{tpu_custom_call.1} parent=5 // pred_region
        %s119 = ssub.s32 %s11, 1
        %p120 = scmp.lt.s32.totalorder %s16, 3
        %s121 = scalar_select %p120, %s16, 3
        %s122 = smul.addr %s121, 8
        %s123 = scalar_lea.vmem %s0, %s122
        %p124 = pneg %p37
        %p125 = pneg %p34
        %p126 = pneg %p58
        %p127 = pneg %p55
        %p128 = pneg %p84
        %p129 = pneg %p81
        %s130 = sand.u32 %s71, 1
        %s131 = scalar_lea.sflag [#allocation3], %s130
        %s132 = sand.u32 %s71, 1
        %s133 = smul.addr %s132, 2
        %s134 = scalar_lea.vmem [#allocation2], %s133
        %p135 = scmp.lt.s32.totalorder %s16, 3
        %s136 = scalar_select %p135, %s16, 3
        %s137 = smul.addr %s136, 8
        %s138 = scalar_lea.vmem %s0, %s137
        %v139 = vld [vmem:[%s138] sm:$0xff]
        %v140 = vld [vmem:[%s1] sm:$0x7]
        %142 = vset.pattern.permute.xlu0 0
        %143 = vperm.xlu0 %142, %v139
        %v144 = vpop.permute.xlu0 %143
        %v146 = vlaneseq
        %v147 = vshrl.u32 %v146, 7
        %v148 = vsub.s32 0, %v147
        %v149 = vrot.slane %v140, %v148
        %v150 = vmul.f32 %v144, %v149
        %151 = vset.pattern.permute.xlu0 1
        %152 = vperm.xlu0 %151, %v139
        %v153 = vpop.permute.xlu0 %152
        %v155 = vlaneseq
        %v156 = vshrl.u32 %v155, 7
        %v157 = vsub.s32 1, %v156
        %v158 = vrot.slane %v140, %v157
        %v159 = vmul.f32 %v153, %v158
        %v160 = vadd.f32 %v150, %v159
        %161 = vset.pattern.permute.xlu0 2
        %162 = vperm.xlu0 %161, %v139
        %v163 = vpop.permute.xlu0 %162
        %v165 = vlaneseq
        %v166 = vshrl.u32 %v165, 7
        %v167 = vsub.s32 2, %v166
        %v168 = vrot.slane %v140, %v167
        %v169 = vmul.f32 %v163, %v168
        %v170 = vadd.f32 %v160, %v169
        %vm171 = vcmask 523264
        %v172 = vsel %vm171, %v170, 0.0
        %v173 = vrot.slane %v172, 4
        %v174 = vadd.f32 %v172, %v173
        %v175 = vrot.slane %v174, 2
        %v176 = vadd.f32 %v174, %v175
        %v177 = vrot.slane %v176, 1
        %v178 = vadd.f32 %v176, %v177
        %v179 = vmul.f32 %v170, %v170
        %v180 = vsel %vm171, %v179, 0.0
        %v181 = vrot.slane %v180, 4
        %v182 = vadd.f32 %v180, %v181
        %v183 = vrot.slane %v182, 2
        %v184 = vadd.f32 %v182, %v183
        %v185 = vrot.slane %v184, 1
        %v186 = vadd.f32 %v184, %v185
        %vm187 = vcmask 1040384
        %v188 = vsel %vm187, %v178, %v186
        %vm189 = vcmask 517120
        %190 = vst.msk [vmem:[%s134] sm:$0x3] %vm189, %v188
        %s191 = sand.u32 %s71, 1
        %s192 = scalar_lea.sflag [#allocation3], %s191
        %s193 = sand.u32 %s71, 1
        %s194 = smul.addr %s193, 2
        %s195 = scalar_lea.vmem [#allocation2], %s194
        // Predicated region
        $region29: #{tpu_custom_call.1} parent=27 // pred_check
          %p196 = pneg %p81
        $region30: #{tpu_custom_call.1} parent=27 // pred_check_branch
          %198 = sbr.rel (%p196) target = $region32
        $region31: #{tpu_custom_call.1} parent=27 // pred_region
          %s200 = ssub.s32 32, 32
          %201 = vsyncadd %s192, %s200
          %s202 = smul.addr %s16, 32
          %s203 = scalar_lea.hbm %s2, %s202
          %s205 = sshll.u32 %s195, 4
          %s206 = int_to_ptr.vmem [resolvable:$true] %s205
          %208 = dma.vmem_to_hbm [thread:$0]  %s206, 32, %s203, %s192
        $region32: #{tpu_custom_call.1} parent=27 // pred_fallthru
          _
      $region28: #{tpu_custom_call.1} parent=5 // pred_fallthru
        _
      %p209 = scmp.le.s32.totalorder 2, %s11
      // Predicated region
      $region33: #{tpu_custom_call.1} parent=5 // pred_check
        %p210 = pneg %p209
      $region34: #{tpu_custom_call.1} parent=5 // pred_check_branch
        %212 = sbr.rel (%p210) target = $region36
      $region35: #{tpu_custom_call.1} parent=5 // pred_region
        %s213 = ssub.s32 %s11, 2
        // Predicated region
        $region37: #{tpu_custom_call.1} parent=35 // pred_check
          %p214 = pneg %p87
        $region38: #{tpu_custom_call.1} parent=35 // pred_check_branch
          %216 = sbr.rel (%p214) target = $region40
        $region39: #{tpu_custom_call.1} parent=35 // pred_region
          %s217 = sand.u32 %s72, 1
          %s218 = scalar_lea.sflag [#allocation3], %s217
          %s219 = sand.u32 %s72, 1
          %s220 = smul.addr %s219, 2
          %s221 = scalar_lea.vmem [#allocation2], %s220
          %222 = dma.done %s218, 32
        $region40: #{tpu_custom_call.1} parent=35 // pred_fallthru
          _
      $region36: #{tpu_custom_call.1} parent=5 // pred_fallthru
        _
    $region6: #{tpu_custom_call.1} parent=1 // loop_footer
      %s15 = sadd.s32 1, %s11
    $region7: #{tpu_custom_call.1} parent=1 // loop_footer_branch
      %10 = sbr.rel target = $region3
    $region8: #{tpu_custom_call.1} parent=1 // loop_exit
      _
    %223 = vsyncpa [#allocation3], 1
    %s224 = scalar_lea.sflag [#allocation3], 1
    %225 = vsyncpa %s224, 1

</llo_original>
